<compile_context>
chip_gen: v6e
topology: v6e:2x2x1
jax: 0.10.0
libtpu: 0.0.40
codegen_flags: <defaults>
</compile_context>

<pallas_src>
import functools

import jax
import jax.numpy as jnp
from jax.experimental import pallas as pl
from jax.experimental.pallas import tpu as pltpu


def _sdpa_kernel(q_ref, k_ref, o_ref, *, inv_temperature, valid_lk):
    """One (BT, TQ) tile of attention probabilities.

    q_ref: (BT, TQ, D)   k_ref: (BT, Lk_pad, D)   o_ref: (BT, TQ, Lk_pad)
    """
    # Scale q before the matmul (PyTorch does q / temperature first); this is
    # a D-wide multiply instead of an Lk-wide one on the f32 scores.
    q = q_ref[...] * inv_temperature
    k = k_ref[...]

    # Batched matmul contracting on the shared feature axis D: no explicit
    # k transpose, inputs in native dtype, f32 accumulation on the MXU.
    s = jnp.einsum("bqd,bkd->bqk", q, k, preferred_element_type=jnp.float32)

    # Mask padded key columns (lane padding of Lk up to a multiple of 128) so
    # they get exactly zero probability.  valid_lk is a compile-time constant,
    # so this block vanishes entirely when no padding was needed.
    lk_pad = s.shape[-1]
    if valid_lk != lk_pad:
        col = jax.lax.broadcasted_iota(jnp.int32, s.shape, dimension=2)
        s = jnp.where(col < valid_lk, s, -jnp.inf)

    # Numerically stable softmax over the key axis.
    m = jnp.max(s, axis=-1, keepdims=True)
    e = jnp.exp(s - m)
    denom = jnp.sum(e, axis=-1, keepdims=True)
    # Reciprocal on the narrow (BT, TQ, 1) tensor + broadcast multiply instead
    # of dividing the full (BT, TQ, Lk_pad) tile.
    inv = pl.reciprocal(denom, approx=False)

    # Dropout: identity (inference / eval() semantics).
    o_ref[...] = (e * inv).astype(o_ref.dtype)


def _vmem_budget_and_limit():
    """Per-generation (budget for tiling, vmem_limit_bytes for the compiler)."""
    mib = 1024 * 1024
    try:
        cap = pltpu.get_tpu_info().vmem_capacity_bytes
    except Exception:
        cap = 64 * mib  # be conservative (v7x-sized) if the query is unavailable
    if cap <= 80 * mib:
        # v7x-class: 64 MiB physical per TensorCore -> leave ample headroom
        # for compiler-internal scratch and double-buffering.
        return 26 * mib, 40 * mib
    # v5e / v6e: 128 MiB physical VMEM -> bigger blocks cut per-step overhead
    # and raise the HBM-roofline fraction of this mem-bound kernel.
    return 56 * mib, 96 * mib


def _choose_tiles(B, Lq, Lk_pad, D, in_bytes, out_bytes, budget_bytes):
    """Pick (batch_tile, query_tile, padded_Lq) under the VMEM budget."""

    def footprint(bt, tq):
        # Double-buffered q/k input blocks and attn output blocks, plus three
        # live f32 score-sized temporaries (scores, exp, pre-cast output).
        blocks = (2 * bt * (tq * D + Lk_pad * D) * in_bytes
                  + 2 * bt * tq * Lk_pad * out_bytes)
        scratch = 3 * bt * tq * Lk_pad * 4
        return blocks + scratch

    # Fail loudly instead of silently emitting a configuration that will hit
    # compile-time VMEM OOM (needs the Lk-tiled online-softmax path instead).
    min_tq = min(Lq, 8)
    if footprint(1, min_tq) > budget_bytes:
        raise ValueError(
            "scaled_dot_product_attention: key length %d does not fit the "
            "VMEM budget (%d bytes) even at the minimal query tile; an "
            "Lk-tiled online-softmax kernel is required for this shape."
            % (Lk_pad, budget_bytes))

    # Query tile first (prefer large M per MXU matmul): full axis if it fits
    # (also satisfies the (8,128) rule via 'equal to full dim'), else the
    # largest multiple-of-8 power-of-two tile that fits.
    if footprint(1, Lq) <= budget_bytes:
        tq = Lq
    else:
        tq = 2048
        while tq > 8 and footprint(1, tq) > budget_bytes:
            tq //= 2

    Lq_pad = tq * pl.cdiv(Lq, tq)
    n_q_tiles = Lq_pad // tq

    # Batch tile second, capped at 8: each batch element of 'bqd,bkd->bqk'
    # lowers to its own MXU matmul (M=tq, K=D, N=Lk), so many tiny matmuls
    # from a big bt are a poor trade.  Also keep at least two grid steps along
    # a parallel axis when possible so both v7x TensorCores get work.
    max_bt = min(8, B)
    if n_q_tiles == 1 and B >= 2:
        max_bt = min(max_bt, B // 2)
    bt = 1
    for cand in range(max_bt, 0, -1):
        if B % cand == 0 and footprint(cand, tq) <= budget_bytes:
            bt = cand
            break
    return bt, tq, Lq_pad


def scaled_dot_product_attention(q, k, temperature):
    """q: (B, Lq, D), k: (B, Lk, D) -> attn = softmax((q/temperature) @ k^T), (B, Lq, Lk)."""
    B, Lq, D = q.shape
    Bk, Lk, Dk = k.shape
    assert B == Bk and D == Dk, "q and k must share batch and feature dims"

    in_bytes = jnp.dtype(q.dtype).itemsize
    out_bytes = in_bytes  # attn stored in q.dtype

    # Lane-dense output: pad the key axis to a multiple of 128 so the output
    # stores are full (unmasked) vector stores.  Padded key rows are zeros;
    # the kernel masks their scores to -inf so they get zero probability.
    Lk_pad = 128 * pl.cdiv(Lk, 128)
    if Lk_pad != Lk:
        k = jnp.pad(k, ((0, 0), (0, Lk_pad - Lk), (0, 0)))

    budget_bytes, vmem_limit = _vmem_budget_and_limit()
    bt, tq, Lq_pad = _choose_tiles(B, Lq, Lk_pad, D, in_bytes, out_bytes,
                                   budget_bytes)

    # Pad the query axis so it divides evenly into TQ tiles.  Padded rows see
    # real keys (softmax well defined, no NaNs) and are sliced off after.
    if Lq_pad != Lq:
        q = jnp.pad(q, ((0, 0), (0, Lq_pad - Lq), (0, 0)))

    n_b_tiles = B // bt
    n_q_tiles = Lq_pad // tq
    grid = (n_b_tiles, n_q_tiles)

    # Advisory cost estimate.  k is resident across the query-tile axis (its
    # index_map is constant in i), so its bytes are counted exactly once.
    cost = pl.CostEstimate(
        flops=2 * B * Lq_pad * Lk_pad * D + 4 * B * Lq_pad * Lk_pad,
        transcendentals=B * Lq_pad * Lk_pad,  # exp
        bytes_accessed=(B * Lq_pad * D * in_bytes          # q read once
                        + B * Lk_pad * D * in_bytes        # k read once
                        + B * Lq_pad * Lk_pad * out_bytes  # attn written once
                        ),
    )

    kernel = functools.partial(_sdpa_kernel,
                               inv_temperature=1.0 / float(temperature),
                               valid_lk=Lk)

    attn = pl.pallas_call(
        kernel,
        out_shape=jax.ShapeDtypeStruct((B, Lq_pad, Lk_pad), q.dtype),
        grid_spec=pltpu.PrefetchScalarGridSpec(
            num_scalar_prefetch=0,
            grid=grid,
            in_specs=[
                pl.BlockSpec((bt, tq, D), lambda b, i: (b, i, 0)),
                pl.BlockSpec((bt, Lk_pad, D), lambda b, i: (b, 0, 0)),
            ],
            out_specs=pl.BlockSpec((bt, tq, Lk_pad), lambda b, i: (b, i, 0)),
        ),
        compiler_params=pltpu.CompilerParams(
            dimension_semantics=("parallel", "parallel"),
            vmem_limit_bytes=vmem_limit,
        ),
        cost_estimate=cost,
    )(q, k)

    if Lq_pad != Lq or Lk_pad != Lk:
        attn = attn[:, :Lq, :Lk]
    return attn


if __name__ == "__main__":
    # Small shapes consistent with the module: batch=2, time(seq)=8,
    # nfeature(hidden)=32; temperature = nfeature ** 0.5.
    B, L, D = 2, 8, 32
    temperature = float(D) ** 0.5

    key = jax.random.PRNGKey(0)
    kq, kk = jax.random.split(key)
    q = jax.random.normal(kq, (B, L, D), dtype=jnp.float32)
    k = jax.random.normal(kk, (B, L, D), dtype=jnp.float32)

    attn = scaled_dot_product_attention(q, k, temperature)
    attn = jax.block_until_ready(attn)

    # Reference check in plain JAX (same op order as PyTorch: q/temperature first).
    ref = jax.nn.softmax(jnp.einsum("bqd,bkd->bqk", q / temperature, k), axis=-1)
    assert attn.shape == (B, L, L)
    assert jnp.allclose(attn, ref, atol=1e-5, rtol=1e-5)

    print("KERNEL_OK")
</pallas_src>

<mosaic_0001>
module attributes {stable_mosaic.version = 11 : i64} {
  func.func @_sdpa_kernel(%arg0: i32, %arg1: i32, %arg2: memref<1x8x32xf32, #tpu.memory_space<vmem>>, %arg3: memref<1x128x32xf32, #tpu.memory_space<vmem>>, %arg4: memref<1x8x128xf32, #tpu.memory_space<vmem>>) attributes {dimension_semantics = [#tpu.dimension_semantics<parallel>, #tpu.dimension_semantics<parallel>], iteration_bounds = array<i64: 2, 1>, scalar_prefetch = 0 : i64, scratch_operands = 0 : i64, tpu.core_type = #tpu.core_type<tc>, window_params = [{transform_indices = @transform_0, window_bounds = array<i64: 1, 8, 32>}, {transform_indices = @transform_1, window_bounds = array<i64: 1, 128, 32>}, {transform_indices = @transform_2, window_bounds = array<i64: 1, 8, 128>}]} {
    %c0 = arith.constant 0 : index
    %c0_0 = arith.constant 0 : index
    %c0_1 = arith.constant 0 : index
    %0 = vector.load %arg2[%c0, %c0_0, %c0_1] : memref<1x8x32xf32, #tpu.memory_space<vmem>>, vector<1x8x32xf32>
    %cst = arith.constant 0.176776692 : f32
    %1 = vector.broadcast %cst : f32 to vector<1x8x32xf32>
    %2 = arith.mulf %0, %1 : vector<1x8x32xf32>
    %c0_2 = arith.constant 0 : index
    %c0_3 = arith.constant 0 : index
    %c0_4 = arith.constant 0 : index
    %3 = vector.load %arg3[%c0_2, %c0_3, %c0_4] : memref<1x128x32xf32, #tpu.memory_space<vmem>>, vector<1x128x32xf32>
    "tpu.trace_start"() <{level = 10 : i32, message = "bqd,bkd->bqk"}> : () -> ()
    %cst_5 = arith.constant dense<0.000000e+00> : vector<1x8x128xf32>
    %4 = tpu.matmul %2, %3, %cst_5 {dimension_numbers = #tpu.dot_dimension_numbers<[2], [2], [1], [1], [0, 0, 0, 1, 1, 1], [0], [0]>} : vector<1x8x32xf32>, vector<1x128x32xf32>, vector<1x8x128xf32> -> vector<1x8x128xf32>
    "tpu.trace_stop"() : () -> ()
    %5 = tpu.iota {dimensions = array<i32: 2>} : vector<1x8x128xi32>
    %c8_i32 = arith.constant 8 : i32
    %6 = vector.broadcast %c8_i32 : i32 to vector<1x8x128xi32>
    %7 = arith.cmpi slt, %5, %6 : vector<1x8x128xi32>
    %cst_6 = arith.constant 0xFF800000 : f32
    %8 = vector.broadcast %cst_6 : f32 to vector<1x8x128xf32>
    %9 = arith.select %7, %4, %8 : vector<1x8x128xi1>, vector<1x8x128xf32>
    %cst_7 = arith.constant dense<0xFF800000> : vector<1x8xf32>
    %10 = vector.multi_reduction <maximumf>, %9, %cst_7 [2] : vector<1x8x128xf32> to vector<1x8xf32>
    %11 = vector.shape_cast %10 : vector<1x8xf32> to vector<1x8x1xf32>
    %12 = vector.broadcast %11 : vector<1x8x1xf32> to vector<1x8x128xf32>
    %13 = arith.subf %9, %12 : vector<1x8x128xf32>
    %14 = math.exp %13 : vector<1x8x128xf32>
    %cst_8 = arith.constant dense<0.000000e+00> : vector<1x8xf32>
    %15 = vector.multi_reduction <add>, %14, %cst_8 [2] : vector<1x8x128xf32> to vector<1x8xf32>
    %16 = vector.shape_cast %15 : vector<1x8xf32> to vector<1x8x1xf32>
    %17 = tpu.reciprocal %16 : vector<1x8x1xf32> -> vector<1x8x1xf32>
    %18 = vector.broadcast %17 : vector<1x8x1xf32> to vector<1x8x128xf32>
    %19 = arith.mulf %14, %18 : vector<1x8x128xf32>
    %c0_9 = arith.constant 0 : index
    %c0_10 = arith.constant 0 : index
    %c0_11 = arith.constant 0 : index
    %20 = vector.load %arg4[%c0_9, %c0_10, %c0_11] : memref<1x8x128xf32, #tpu.memory_space<vmem>>, vector<1x8x128xf32>
    tpu.vector_store %arg4[%c0_9, %c0_10, %c0_11], %19 {strides = array<i32>} : memref<1x8x128xf32, #tpu.memory_space<vmem>>, vector<1x8x128xf32>,
    return
  }
  func.func @transform_0(%arg0: i32, %arg1: i32) -> (i32, i32, i32) {
    %c0_i32 = arith.constant 0 : i32
    %c0_i32_0 = arith.constant 0 : i32
    return %arg0, %arg1, %c0_i32 : i32, i32, i32
  }
  func.func @transform_1(%arg0: i32, %arg1: i32) -> (i32, i32, i32) {
    %c0_i32 = arith.constant 0 : i32
    %c0_i32_0 = arith.constant 0 : i32
    %c0_i32_1 = arith.constant 0 : i32
    return %arg0, %c0_i32, %c0_i32_0 : i32, i32, i32
  }
  func.func @transform_2(%arg0: i32, %arg1: i32) -> (i32, i32, i32) {
    %c0_i32 = arith.constant 0 : i32
    %c0_i32_0 = arith.constant 0 : i32
    return %arg0, %arg1, %c0_i32 : i32, i32, i32
  }
}

</mosaic_0001>

<llo_original>
// kernel: tpu_custom_call.1
$region0: #{tpu_custom_call.1}
  #allocation0 [shape = 'u32[]', space=smem, size = 0x4, offset = 0x4, fixed_abs, tag = 'smem constant byte address 0x4 - core index']
  #allocation1 [shape = 'u32[144,128]{1,0:T(1,128)}', space=vmem, size = 0x12000, scoped, tag = 'internal scratch']
  %s0 = inlined_call_operand.vmem [shape: f32[2,8,32], index: 0, kind: input, shape index: {}]
  %s1 = inlined_call_operand.vmem [shape: f32[2,128,32], index: 1, kind: input, shape index: {}]
  %s2 = inlined_call_operand.hbm [shape: f32[2,8,128], index: 2, kind: output, shape index: {}]
  %s3 = sld [smem:[#allocation0]]
  $region41: #{tpu_custom_call.1} parent=0
    _
  %s5 = ssub.s32 1, %s3
  %s6 = scalar_select 0, %s5, %s3
  $region1: #{tpu_custom_call.1} parent=0
    #allocation2 [shape = 'u8[8192]{0}', space=vmem, size = 0x2000, scoped, tag = 'output window, operand 0']
    #allocation3 [shape = 's32[2]{0}', space=sflag, size = 0x8, scoped, tag = 'scoped memory for tpu_custom_call.1']
    %7 = vsyncpa [#allocation3], 0
    %s8 = scalar_lea.sflag [#allocation3], 1
    %9 = vsyncpa %s8, 0
    loop: start=0, step=1, limit=4
    $region2: #{tpu_custom_call.1} parent=1 // loop_pre_header
      _
    $region3: #{tpu_custom_call.1} parent=1 // loop_header
      %s11 = sphi 0, %s15
      %p12 = scmp.ge.s32.totalorder %s11, 4
      %s18 = sphi 0, %s30
      %s19 = sphi 0, %s26
      %s20 = sphi 0, %s18
      %s21 = sphi 0, %s19
      %s22 = sphi 0, %s20
      %s23 = sphi 0, %s21
      %s35 = sphi 0, %s37
      %s38 = sphi 0, %s35
      %s39 = sphi 0, %s38
      %s55 = sphi 0, %s39
      %s61 = sphi 0, %s63
      %s64 = sphi 0, %s61
      %s65 = sphi 0, %s64
      %s81 = sphi 0, %s65
      %s89 = sphi 0, %s91
      %s92 = sphi 0, %s89
      %s93 = sphi 0, %s92
      %s109 = sphi 0, %s93
    $region4: #{tpu_custom_call.1} parent=1 // loop_header_branch
      %14 = sbr.rel (%p12) target = $region8
    $region5: #{tpu_custom_call.1} parent=1 // loop_body
      %s16 = ssub.s32 %s11, 1
      %s17 = ssub.s32 %s11, 2
      %s24 = sadd.s32 1, %s19
      %p25 = scmp.ge.s32.totalorder %s24, 1
      %s26 = scalar_select %p25, 0, %s24
      %s27 = sadd.s32 1, %s18
      %s28 = scalar_select %p25, %s27, %s18
      %p29 = scmp.ge.s32.totalorder %s28, 2
      %s30 = scalar_select %p29, 0, %s28
      %s31 = ssub.s32 %s18, %s30
      %s32 = ssub.s32 %s19, %s26
      %s33 = sor.u32 %s31, %s32
      %p34 = scmp.eq.s32.totalorder %s33, 0
      %s36 = sadd.s32 %s35, 1
      %s37 = scalar_select %p34, %s35, %s36
      %p40 = pneg %p34
      %p41 = scmp.eq.s32.totalorder %s11, 1
      %p42 = por %p40, %p41
      %p43 = scmp.ne.s32.totalorder %s35, %s38
      %p44 = scmp.eq.s32.totalorder %s11, 0
      %p45 = por %p43, %p44
      %p46 = scmp.ne.s32.totalorder %s35, %s38
      %p47 = scmp.eq.s32.totalorder %s16, 1
      %p48 = por %p46, %p47
      %p49 = scmp.ne.s32.totalorder %s38, %s39
      %p50 = scmp.eq.s32.totalorder %s16, 0
      %p51 = por %p49, %p50
      %p52 = scmp.ne.s32.totalorder %s38, %s39
      %p53 = scmp.eq.s32.totalorder %s17, 1
      %p54 = por %p52, %p53
      %p56 = scmp.ne.s32.totalorder %s39, %s55
      %p57 = scmp.eq.s32.totalorder %s17, 0
      %p58 = por %p56, %p57
      %s59 = ssub.s32 %s18, %s30
      %p60 = scmp.eq.s32.totalorder %s59, 0
      %s62 = sadd.s32 %s61, 1
      %s63 = scalar_select %p60, %s61, %s62
      %p66 = pneg %p60
      %p67 = scmp.eq.s32.totalorder %s11, 1
      %p68 = por %p66, %p67
      %p69 = scmp.ne.s32.totalorder %s61, %s64
      %p70 = scmp.eq.s32.totalorder %s11, 0
      %p71 = por %p69, %p70
      %p72 = scmp.ne.s32.totalorder %s61, %s64
      %p73 = scmp.eq.s32.totalorder %s16, 1
      %p74 = por %p72, %p73
      %p75 = scmp.ne.s32.totalorder %s64, %s65
      %p76 = scmp.eq.s32.totalorder %s16, 0
      %p77 = por %p75, %p76
      %p78 = scmp.ne.s32.totalorder %s64, %s65
      %p79 = scmp.eq.s32.totalorder %s17, 1
      %p80 = por %p78, %p79
      %p82 = scmp.ne.s32.totalorder %s65, %s81
      %p83 = scmp.eq.s32.totalorder %s17, 0
      %p84 = por %p82, %p83
      %s85 = ssub.s32 %s18, %s30
      %s86 = ssub.s32 %s19, %s26
      %s87 = sor.u32 %s85, %s86
      %p88 = scmp.eq.s32.totalorder %s87, 0
      %s90 = sadd.s32 %s89, 1
      %s91 = scalar_select %p88, %s89, %s90
      %p94 = pneg %p88
      %p95 = scmp.eq.s32.totalorder %s11, 1
      %p96 = por %p94, %p95
      %p97 = scmp.ne.s32.totalorder %s89, %s92
      %p98 = scmp.eq.s32.totalorder %s11, 0
      %p99 = por %p97, %p98
      %p100 = scmp.ne.s32.totalorder %s89, %s92
      %p101 = scmp.eq.s32.totalorder %s16, 1
      %p102 = por %p100, %p101
      %p103 = scmp.ne.s32.totalorder %s92, %s93
      %p104 = scmp.eq.s32.totalorder %s16, 0
      %p105 = por %p103, %p104
      %p106 = scmp.ne.s32.totalorder %s92, %s93
      %p107 = scmp.eq.s32.totalorder %s17, 1
      %p108 = por %p106, %p107
      %p110 = scmp.ne.s32.totalorder %s93, %s109
      %p111 = scmp.eq.s32.totalorder %s17, 0
      %p112 = por %p110, %p111
      %p113 = scmp.le.s32.totalorder 1, %s11
      %p114 = scmp.lt.s32.totalorder %s11, 3
      %p115 = pnand %p113, %p114
      %p116 = pneg %p115
      // Predicated region
      $region9: #{tpu_custom_call.1} parent=5 // pred_check
        _
      $region10: #{tpu_custom_call.1} parent=5 // pred_check_branch
        %118 = sbr.rel (%p115) target = $region12
      $region11: #{tpu_custom_call.1} parent=5 // pred_region
        %s119 = ssub.s32 %s11, 1
      $region12: #{tpu_custom_call.1} parent=5 // pred_fallthru
        _
      %p120 = scmp.lt.s32.totalorder %s11, 2
      // Predicated region
      $region13: #{tpu_custom_call.1} parent=5 // pred_check
        %p121 = pneg %p120
      $region14: #{tpu_custom_call.1} parent=5 // pred_check_branch
        %123 = sbr.rel (%p121) target = $region16
      $region15: #{tpu_custom_call.1} parent=5 // pred_region
        // Predicated region
        $region17: #{tpu_custom_call.1} parent=15 // pred_check
          %p124 = pneg %p45
        $region18: #{tpu_custom_call.1} parent=15 // pred_check_branch
          %126 = sbr.rel (%p124) target = $region20
        $region19: #{tpu_custom_call.1} parent=15 // pred_region
          %p127 = scmp.lt.s32.totalorder %s18, 1
          %s128 = scalar_select %p127, %s18, 1
          %p129 = scmp.lt.s32.totalorder %s19, 0
          %s130 = scalar_select %p129, %s19, 0
          %s131 = sadd.s32 %s130, %s128
          %s132 = smul.addr %s131, 8
          %s133 = scalar_lea.vmem %s0, %s132
        $region20: #{tpu_custom_call.1} parent=15 // pred_fallthru
          _
        // Predicated region
        $region21: #{tpu_custom_call.1} parent=15 // pred_check
          %p134 = pneg %p71
        $region22: #{tpu_custom_call.1} parent=15 // pred_check_branch
          %136 = sbr.rel (%p134) target = $region24
        $region23: #{tpu_custom_call.1} parent=15 // pred_region
          %p137 = scmp.lt.s32.totalorder %s18, 1
          %s138 = scalar_select %p137, %s18, 1
          %s139 = smul.addr %s138, 16
          %s140 = smul.addr %s139, 8
          %s141 = scalar_lea.vmem %s1, %s140
        $region24: #{tpu_custom_call.1} parent=15 // pred_fallthru
          _
      $region16: #{tpu_custom_call.1} parent=5 // pred_fallthru
        _
      %p142 = scmp.le.s32.totalorder 1, %s11
      %p143 = scmp.lt.s32.totalorder %s11, 3
      %p144 = pnand %p142, %p143
      %p145 = pneg %p144
      // Predicated region
      $region25: #{tpu_custom_call.1} parent=5 // pred_check
        _
      $region26: #{tpu_custom_call.1} parent=5 // pred_check_branch
        %147 = sbr.rel (%p144) target = $region28
      $region27: #{tpu_custom_call.1} parent=5 // pred_region
        %s148 = ssub.s32 %s11, 1
        %p149 = scmp.lt.s32.totalorder %s20, 1
        %s150 = scalar_select %p149, %s20, 1
        %p151 = scmp.lt.s32.totalorder %s21, 0
        %s152 = scalar_select %p151, %s21, 0
        %s153 = sadd.s32 %s152, %s150
        %s154 = smul.addr %s153, 8
        %s155 = scalar_lea.vmem %s0, %s154
        %p156 = pneg %p51
        %p157 = pneg %p48
        %p158 = scmp.lt.s32.totalorder %s20, 1
        %s159 = scalar_select %p158, %s20, 1
        %s160 = smul.addr %s159, 16
        %s161 = smul.addr %s160, 8
        %s162 = scalar_lea.vmem %s1, %s161
        %p163 = pneg %p77
        %p164 = pneg %p74
        %p165 = pneg %p105
        %p166 = pneg %p102
        %s167 = sand.u32 %s92, 1
        %s168 = scalar_lea.sflag [#allocation3], %s167
        %s169 = sand.u32 %s92, 1
        %s170 = smul.addr %s169, 8
        %s171 = scalar_lea.vmem [#allocation2], %s170
        %p172 = scmp.lt.s32.totalorder %s20, 1
        %s173 = scalar_select %p172, %s20, 1
        %p174 = scmp.lt.s32.totalorder %s21, 0
        %s175 = scalar_select %p174, %s21, 0
        %s176 = sadd.s32 %s175, %s173
        %s177 = smul.addr %s176, 8
        %s178 = scalar_lea.vmem %s0, %s177
        %p179 = scmp.lt.s32.totalorder %s20, 1
        %s180 = scalar_select %p179, %s20, 1
        %s181 = smul.addr %s180, 16
        %s182 = smul.addr %s181, 8
        %s183 = scalar_lea.vmem %s1, %s182
        %v184 = vld [vmem:[%s178] sm:$0xff]
        %v185 = vmul.f32 %v184, 0.17677669
        %v186 = vld [vmem:[%s183] sm:$0xff]
        %v187 = vld [vmem:[%s183 + $0x8] sm:$0xff]
        %v188 = vld [vmem:[%s183 + $0x10] sm:$0xff]
        %v189 = vld [vmem:[%s183 + $0x18] sm:$0xff]
        %v190 = vld [vmem:[%s183 + $0x20] sm:$0xff]
        %v191 = vld [vmem:[%s183 + $0x28] sm:$0xff]
        %v192 = vld [vmem:[%s183 + $0x30] sm:$0xff]
        %v193 = vld [vmem:[%s183 + $0x38] sm:$0xff]
        %v194 = vld [vmem:[%s183 + $0x40] sm:$0xff]
        %v195 = vld [vmem:[%s183 + $0x48] sm:$0xff]
        %v196 = vld [vmem:[%s183 + $0x50] sm:$0xff]
        %v197 = vld [vmem:[%s183 + $0x58] sm:$0xff]
        %v198 = vld [vmem:[%s183 + $0x60] sm:$0xff]
        %v199 = vld [vmem:[%s183 + $0x68] sm:$0xff]
        %v200 = vld [vmem:[%s183 + $0x70] sm:$0xff]
        %v201 = vld [vmem:[%s183 + $0x78] sm:$0xff]
        %vm202 = vcmask 261120
        %v204 = vsel %vm202, %v185, 0
        %v207 = vsel %vm202, %v186, 0
        %v210 = vsel %vm202, %v187, 0
        %v213 = vsel %vm202, %v188, 0
        %v216 = vsel %vm202, %v189, 0
        %v219 = vsel %vm202, %v190, 0
        %v222 = vsel %vm202, %v191, 0
        %v225 = vsel %vm202, %v192, 0
        %v228 = vsel %vm202, %v193, 0
        %v231 = vsel %vm202, %v194, 0
        %v234 = vsel %vm202, %v195, 0
        %v237 = vsel %vm202, %v196, 0
        %v240 = vsel %vm202, %v197, 0
        %v243 = vsel %vm202, %v198, 0
        %v246 = vsel %vm202, %v199, 0
        %v249 = vsel %vm202, %v200, 0
        %v252 = vsel %vm202, %v201, 0
        %254 = vmatprep.subr.mxu0 0.0
        %255 = vmatpush1.xpose.msra.mxu0 %v252
        %256 = vmatprep.subr.mxu0 0.0
        %257 = vmatpush1.xpose.msra.mxu0 %v249
        %258 = vmatprep.subr.mxu0 0.0
        %259 = vmatpush1.xpose.msra.mxu0 %v246
        %260 = vmatprep.subr.mxu0 0.0
        %261 = vmatpush1.xpose.msra.mxu0 %v243
        %262 = vmatprep.subr.mxu0 0.0
        %263 = vmatpush1.xpose.msra.mxu0 %v240
        %264 = vmatprep.subr.mxu0 0.0
        %265 = vmatpush1.xpose.msra.mxu0 %v237
        %266 = vmatprep.subr.mxu0 0.0
        %267 = vmatpush1.xpose.msra.mxu0 %v234
        %268 = vmatprep.subr.mxu0 0.0
        %269 = vmatpush1.xpose.msra.mxu0 %v231
        %270 = vmatprep.subr.mxu0 0.0
        %271 = vmatpush1.xpose.msra.mxu0 %v228
        %272 = vmatprep.subr.mxu0 0.0
        %273 = vmatpush1.xpose.msra.mxu0 %v225
        %274 = vmatprep.subr.mxu0 0.0
        %275 = vmatpush1.xpose.msra.mxu0 %v222
        %276 = vmatprep.subr.mxu0 0.0
        %277 = vmatpush1.xpose.msra.mxu0 %v219
        %278 = vmatprep.subr.mxu0 0.0
        %279 = vmatpush1.xpose.msra.mxu0 %v216
        %280 = vmatprep.subr.mxu0 0.0
        %281 = vmatpush1.xpose.msra.mxu0 %v213
        %282 = vmatprep.subr.mxu0 0.0
        %283 = vmatpush1.xpose.msra.mxu0 %v210
        %284 = vmatprep.subr.mxu0 0.0
        %285 = vmatpush1.xpose.msra.mxu0 %v207
        %286 = vmatprep.subr.mxu0 0.0
        %287 = vmatpush2.xpose.msra.mxu0 0.0
        %288 = vmatprep.subr.mxu0 0.0
        %289 = vmatpush2.xpose.msra.mxu0 0.0
        %290 = vmatprep.subr.mxu0 0.0
        %291 = vmatpush2.xpose.msra.mxu0 0.0
        %292 = vmatprep.subr.mxu0 0.0
        %293 = vmatpush2.xpose.msra.mxu0 0.0
        %294 = vmatprep.subr.mxu0 0.0
        %295 = vmatpush2.xpose.msra.mxu0 0.0
        %296 = vmatprep.subr.mxu0 0.0
        %297 = vmatpush2.xpose.msra.mxu0 0.0
        %298 = vmatprep.subr.mxu0 0.0
        %299 = vmatpush2.xpose.msra.mxu0 0.0
        %300 = vmatprep.subr.mxu0 0.0
        %301 = vmatpush2.xpose.msra.mxu0 0.0
        %302 = vmatprep.subr.mxu0 0.0
        %303 = vmatpush2.xpose.msra.mxu0 0.0
        %304 = vmatprep.subr.mxu0 0.0
        %305 = vmatpush2.xpose.msra.mxu0 0.0
        %306 = vmatprep.subr.mxu0 0.0
        %307 = vmatpush2.xpose.msra.mxu0 0.0
        %308 = vmatprep.subr.mxu0 0.0
        %309 = vmatpush2.xpose.msra.mxu0 0.0
        %310 = vmatprep.subr.mxu0 0.0
        %311 = vmatpush2.xpose.msra.mxu0 0.0
        %312 = vmatprep.subr.mxu0 0.0
        %313 = vmatpush2.xpose.msra.mxu0 0.0
        %314 = vmatprep.subr.mxu0 0.0
        %315 = vmatpush2.xpose.msra.mxu0 0.0
        %316 = vmatprep.subr.mxu0 0.0
        %317 = vmatpush2.xpose.msra.mxu0 0.0
        %318 = vmatprep.mubr.f32.mxu0 0.0
        %319 = vmatmul.mubr.f32.gmra.mxu0 %v204
        %v320 = vpop.f32.mrf.mxu0
        %v321 = vadd.f32 0.0, %v320
        %v322 = vpop.f32.mrf.mxu0
        %323 = vdwg.mxu0
        %v324 = vlaneseq
        %v325 = vand.u32 %v324, 127
        %vm326 = vcmp.lt.s32.totalorder %v325, 8
        %v327 = vsel %vm326, %v321, -inf
        %328 = vmax.xlane.f32.xlu0 %v327
        %v329 = vpop.xlane.xlu0 %328
        %v330 = vsub.f32 %v327, %v329
        %v331 = vmul.f32 %v330, 1.442695
        %v332 = vpow.pop %v331
        %333 = vadd.xlane.f32.xlu0 %v332
        %v334 = vpop.xlane.xlu0 %333
        %v335 = vrcp.pop %v334
        %v336 = vmul.f32 %v332, %v335
        %337 = vst [vmem:[%s171] sm:$0xff] %v336
        %s338 = sand.u32 %s92, 1
        %s339 = scalar_lea.sflag [#allocation3], %s338
        %s340 = sand.u32 %s92, 1
        %s341 = smul.addr %s340, 8
        %s342 = scalar_lea.vmem [#allocation2], %s341
        // Predicated region
        $region29: #{tpu_custom_call.1} parent=27 // pred_check
          %p343 = pneg %p102
        $region30: #{tpu_custom_call.1} parent=27 // pred_check_branch
          %345 = sbr.rel (%p343) target = $region32
        $region31: #{tpu_custom_call.1} parent=27 // pred_region
          %s347 = ssub.s32 128, 128
          %348 = vsyncadd %s339, %s347
          %s349 = sadd.s32 %s21, %s20
          %s350 = smul.addr %s349, 128
          %s351 = scalar_lea.hbm %s2, %s350
          %s353 = sshll.u32 %s342, 4
          %s354 = int_to_ptr.vmem [resolvable:$true] %s353
          %356 = dma.vmem_to_hbm [thread:$0]  %s354, 128, %s351, %s339
        $region32: #{tpu_custom_call.1} parent=27 // pred_fallthru
          _
      $region28: #{tpu_custom_call.1} parent=5 // pred_fallthru
        _
      %p357 = scmp.le.s32.totalorder 2, %s11
      // Predicated region
      $region33: #{tpu_custom_call.1} parent=5 // pred_check
        %p358 = pneg %p357
      $region34: #{tpu_custom_call.1} parent=5 // pred_check_branch
        %360 = sbr.rel (%p358) target = $region36
      $region35: #{tpu_custom_call.1} parent=5 // pred_region
        %s361 = ssub.s32 %s11, 2
        // Predicated region
        $region37: #{tpu_custom_call.1} parent=35 // pred_check
          %p362 = pneg %p108
        $region38: #{tpu_custom_call.1} parent=35 // pred_check_branch
          %364 = sbr.rel (%p362) target = $region40
        $region39: #{tpu_custom_call.1} parent=35 // pred_region
          %s365 = sand.u32 %s93, 1
          %s366 = scalar_lea.sflag [#allocation3], %s365
          %s367 = sand.u32 %s93, 1
          %s368 = smul.addr %s367, 8
          %s369 = scalar_lea.vmem [#allocation2], %s368
          %370 = dma.done %s366, 128
        $region40: #{tpu_custom_call.1} parent=35 // pred_fallthru
          _
      $region36: #{tpu_custom_call.1} parent=5 // pred_fallthru
        _
    $region6: #{tpu_custom_call.1} parent=1 // loop_footer
      %s15 = sadd.s32 1, %s11
    $region7: #{tpu_custom_call.1} parent=1 // loop_footer_branch
      %10 = sbr.rel target = $region3
    $region8: #{tpu_custom_call.1} parent=1 // loop_exit
      _
    %371 = vsyncpa [#allocation3], 1
    %s372 = scalar_lea.sflag [#allocation3], 1
    %373 = vsyncpa %s372, 1

</llo_original>
